<compile_context>
chip_gen: v6e
topology: v6e:2x2x1
jax: 0.10.0
libtpu: 0.0.40
codegen_flags: <defaults>
</compile_context>

<pallas_src>
import jax
import jax.numpy as jnp
from jax import lax
from jax.experimental import pallas as pl
from jax.experimental.pallas import tpu as pltpu


def _mlp_kernel(x_ref, w1_ref, b1_ref, w2_ref, b2_ref, w3_ref, b3_ref, o_ref):
    # Layer 1: (tile_b, F) bf16 @ (F, 128) bf16 -> f32 accum on the MXU.
    x = x_ref[...]                                                   # (tb, F) bf16
    h1 = jnp.dot(x, w1_ref[...], preferred_element_type=jnp.float32)
    h1 = jnp.maximum(h1 + b1_ref[...], 0.0)                          # (tb, 128) f32

    # Layer 2: re-quantize activations to bf16 for MXU rate, accumulate f32.
    h2 = jnp.dot(h1.astype(jnp.bfloat16), w2_ref[...],
                 preferred_element_type=jnp.float32)
    h2 = jnp.maximum(h2 + b2_ref[...], 0.0)                          # (tb, 64) f32

    # Layer 3 (64 -> 1): contract w3 (1, 64) against h2's feature dim so the
    # result is produced lane-dense as (1, tile_b) -- no masked 1-lane stores.
    z = lax.dot_general(w3_ref[...], h2, (((1,), (1,)), ((), ())),
                        preferred_element_type=jnp.float32)          # (1, tb)
    z = z + b3_ref[0, 0]                                             # SMEM scalar bias

    o_ref[...] = (jax.nn.sigmoid(z) * 4.0 + 1.0).astype(o_ref.dtype)


def movie_rating_nn(x, params, *, tile_b=512):
    """x: (B, num_features) float32 -> (B, 1) float32 in [1, 5]."""
    w1, b1, w2, b2, w3, b3 = params
    B, F = x.shape

    # Lane-dense output requires tile_b to be a multiple of 128.
    tile_b = max(128, tile_b - tile_b % 128)
    num_tiles = pl.cdiv(B, tile_b)
    B_pad = num_tiles * tile_b
    if B_pad != B:
        x = jnp.pad(x, ((0, B_pad - B), (0, 0)))

    # bf16 for the large streams / matmul operands, f32 for biases + last layer.
    x_bf = x.astype(jnp.bfloat16)
    w1_bf = w1.astype(jnp.bfloat16)
    w2_bf = w2.astype(jnp.bfloat16)
    b1_f = b1.astype(jnp.float32)
    b2_f = b2.astype(jnp.float32)
    w3_row = w3.reshape(1, 64).astype(jnp.float32)                   # (1, 64)
    b3_s = b3.reshape(1, 1).astype(jnp.float32)                      # SMEM scalar

    full = lambda i: (0, 0)  # whole-array blocks for the (small) weights

    bytes_accessed = (x_bf.size * 2 + w1_bf.size * 2 + w2_bf.size * 2
                      + b1_f.size * 4 + b2_f.size * 4 + w3_row.size * 4
                      + B_pad * 4)
    cost = pl.CostEstimate(
        flops=2 * B_pad * (F * 128 + 128 * 64 + 64),
        transcendentals=B_pad,
        bytes_accessed=bytes_accessed,
    )

    out_row = pl.pallas_call(
        _mlp_kernel,
        out_shape=jax.ShapeDtypeStruct((1, B_pad), jnp.float32),
        grid_spec=pltpu.PrefetchScalarGridSpec(
            num_scalar_prefetch=0,
            grid=(num_tiles,),
            in_specs=[
                pl.BlockSpec((tile_b, F), lambda i: (i, 0)),          # x tile
                pl.BlockSpec(w1_bf.shape, full),                      # (F, 128) bf16
                pl.BlockSpec(b1_f.shape, full),                       # (1, 128) f32
                pl.BlockSpec(w2_bf.shape, full),                      # (128, 64) bf16
                pl.BlockSpec(b2_f.shape, full),                       # (1, 64) f32
                pl.BlockSpec(w3_row.shape, full),                     # (1, 64) f32
                pl.BlockSpec(memory_space=pltpu.MemorySpace.SMEM),    # (1, 1) scalar
            ],
            out_specs=pl.BlockSpec((1, tile_b), lambda i: (0, i)),    # lane-dense row
        ),
        compiler_params=pltpu.CompilerParams(
            dimension_semantics=("parallel",)),
        cost_estimate=cost,
    )(x_bf, w1_bf, b1_f, w2_bf, b2_f, w3_row, b3_s)

    return out_row[0, :B].reshape(B, 1)


def init_params(num_features, key):
    """Deterministic synthetic init matching nn.Linear shapes (stored as (in, out))."""
    ks = jax.random.split(key, 6)

    def lin(kw, kb, fan_in, fan_out):
        bound = 1.0 / jnp.sqrt(fan_in)
        w = jax.random.uniform(kw, (fan_in, fan_out), jnp.float32, -bound, bound)
        b = jax.random.uniform(kb, (1, fan_out), jnp.float32, -bound, bound)
        return w, b

    w1, b1 = lin(ks[0], ks[1], num_features, 128)
    w2, b2 = lin(ks[2], ks[3], 128, 64)
    w3, b3 = lin(ks[4], ks[5], 64, 1)
    return (w1, b1, w2, b2, w3, b3)


def reference(x, params):
    w1, b1, w2, b2, w3, b3 = params
    h1 = jnp.maximum(x @ w1 + b1, 0.0)
    h2 = jnp.maximum(h1 @ w2 + b2, 0.0)
    z = h2 @ w3 + b3
    return jax.nn.sigmoid(z) * 4.0 + 1.0


if __name__ == "__main__":
    key = jax.random.PRNGKey(0)
    kx, kp = jax.random.split(key)

    num_features = 32
    batch = 16   # deliberately NOT a multiple of tile_b: exercises the padding path
    x = jax.random.normal(kx, (batch, num_features), jnp.float32)
    params = init_params(num_features, kp)

    out = movie_rating_nn(x, params)
    out = jax.block_until_ready(out)

    ref = reference(x, params)  # pure-f32 reference
    assert out.shape == (batch, 1)
    # bf16 inputs/weights with f32 accumulation: relax tolerance vs the f32 ref.
    max_err = float(jnp.max(jnp.abs(out - ref)))
    assert max_err < 5e-2, f"max abs error {max_err}"
    assert bool(jnp.all(jnp.isfinite(out)))

    print("KERNEL_OK")
</pallas_src>

<mosaic_0001>
module attributes {stable_mosaic.version = 11 : i64} {
  func.func @_mlp_kernel(%arg0: i32, %arg1: memref<512x32xbf16, #tpu.memory_space<vmem>>, %arg2: memref<32x128xbf16, #tpu.memory_space<vmem>>, %arg3: memref<1x128xf32, #tpu.memory_space<vmem>>, %arg4: memref<128x64xbf16, #tpu.memory_space<vmem>>, %arg5: memref<1x64xf32, #tpu.memory_space<vmem>>, %arg6: memref<1x64xf32, #tpu.memory_space<vmem>>, %arg7: memref<1x1xf32, #tpu.memory_space<smem>>, %arg8: memref<1x512xf32, #tpu.memory_space<vmem>>) attributes {dimension_semantics = [#tpu.dimension_semantics<parallel>], iteration_bounds = array<i64: 1>, scalar_prefetch = 0 : i64, scratch_operands = 0 : i64, tpu.core_type = #tpu.core_type<tc>, window_params = [{transform_indices = @transform_0, window_bounds = array<i64: 512, 32>}, {pipeline_mode = #tpu.pipeline_mode<synchronous>, transform_indices = @transform_1, window_bounds = array<i64: 32, 128>}, {pipeline_mode = #tpu.pipeline_mode<synchronous>, transform_indices = @transform_2, window_bounds = array<i64: 1, 128>}, {pipeline_mode = #tpu.pipeline_mode<synchronous>, transform_indices = @transform_3, window_bounds = array<i64: 128, 64>}, {pipeline_mode = #tpu.pipeline_mode<synchronous>, transform_indices = @transform_4, window_bounds = array<i64: 1, 64>}, {pipeline_mode = #tpu.pipeline_mode<synchronous>, transform_indices = @transform_5, window_bounds = array<i64: 1, 64>}, {transform_indices = @transform_6, window_bounds = array<i64: 1, 1>}, {transform_indices = @transform_7, window_bounds = array<i64: 1, 512>}]} {
    %c0 = arith.constant 0 : index
    %c0_0 = arith.constant 0 : index
    %0 = vector.load %arg1[%c0, %c0_0] : memref<512x32xbf16, #tpu.memory_space<vmem>>, vector<512x32xbf16>
    %c0_1 = arith.constant 0 : index
    %c0_2 = arith.constant 0 : index
    %1 = vector.load %arg2[%c0_1, %c0_2] : memref<32x128xbf16, #tpu.memory_space<vmem>>, vector<32x128xbf16>
    %cst = arith.constant dense<0.000000e+00> : vector<512x128xf32>
    %2 = tpu.matmul %0, %1, %cst {dimension_numbers = #tpu.dot_dimension_numbers<[1], [0], [0], [1], [0, 0, 1, 1], [], []>} : vector<512x32xbf16>, vector<32x128xbf16>, vector<512x128xf32> -> vector<512x128xf32>
    %c0_3 = arith.constant 0 : index
    %c0_4 = arith.constant 0 : index
    %3 = vector.load %arg3[%c0_3, %c0_4] : memref<1x128xf32, #tpu.memory_space<vmem>>, vector<1x128xf32>
    %4 = vector.broadcast %3 : vector<1x128xf32> to vector<512x128xf32>
    %5 = arith.addf %2, %4 : vector<512x128xf32>
    %cst_5 = arith.constant 0.000000e+00 : f32
    %6 = vector.broadcast %cst_5 : f32 to vector<512x128xf32>
    %7 = arith.maximumf %5, %6 : vector<512x128xf32>
    %8 = arith.truncf %7 : vector<512x128xf32> to vector<512x128xbf16>
    %c0_6 = arith.constant 0 : index
    %c0_7 = arith.constant 0 : index
    %9 = vector.load %arg4[%c0_6, %c0_7] : memref<128x64xbf16, #tpu.memory_space<vmem>>, vector<128x64xbf16>
    %cst_8 = arith.constant dense<0.000000e+00> : vector<512x64xf32>
    %10 = tpu.matmul %8, %9, %cst_8 {dimension_numbers = #tpu.dot_dimension_numbers<[1], [0], [0], [1], [0, 0, 1, 1], [], []>} : vector<512x128xbf16>, vector<128x64xbf16>, vector<512x64xf32> -> vector<512x64xf32>
    %c0_9 = arith.constant 0 : index
    %c0_10 = arith.constant 0 : index
    %11 = vector.load %arg5[%c0_9, %c0_10] : memref<1x64xf32, #tpu.memory_space<vmem>>, vector<1x64xf32>
    %12 = vector.broadcast %11 : vector<1x64xf32> to vector<512x64xf32>
    %13 = arith.addf %10, %12 : vector<512x64xf32>
    %cst_11 = arith.constant 0.000000e+00 : f32
    %14 = vector.broadcast %cst_11 : f32 to vector<512x64xf32>
    %15 = arith.maximumf %13, %14 : vector<512x64xf32>
    %c0_12 = arith.constant 0 : index
    %c0_13 = arith.constant 0 : index
    %16 = vector.load %arg6[%c0_12, %c0_13] : memref<1x64xf32, #tpu.memory_space<vmem>>, vector<1x64xf32>
    %cst_14 = arith.constant dense<0.000000e+00> : vector<1x512xf32>
    %17 = tpu.matmul %16, %15, %cst_14 {dimension_numbers = #tpu.dot_dimension_numbers<[1], [1], [0], [0], [0, 0, 1, 0], [], []>} : vector<1x64xf32>, vector<512x64xf32>, vector<1x512xf32> -> vector<1x512xf32>
    %c0_15 = arith.constant 0 : index
    %c0_16 = arith.constant 0 : index
    %18 = memref.load %arg7[%c0_15, %c0_16] : memref<1x1xf32, #tpu.memory_space<smem>>
    %19 = vector.broadcast %18 : f32 to vector<1x512xf32>
    %20 = arith.addf %17, %19 : vector<1x512xf32>
    %21 = arith.negf %20 : vector<1x512xf32>
    %22 = math.exp %21 : vector<1x512xf32>
    %cst_17 = arith.constant 1.000000e+00 : f32
    %23 = vector.broadcast %cst_17 : f32 to vector<1x512xf32>
    %24 = arith.addf %23, %22 : vector<1x512xf32>
    %25 = arith.divf %23, %24 : vector<1x512xf32>
    %cst_18 = arith.constant 4.000000e+00 : f32
    %26 = vector.broadcast %cst_18 : f32 to vector<1x512xf32>
    %27 = arith.mulf %25, %26 : vector<1x512xf32>
    %cst_19 = arith.constant 1.000000e+00 : f32
    %28 = vector.broadcast %cst_19 : f32 to vector<1x512xf32>
    %29 = arith.addf %27, %28 : vector<1x512xf32>
    %c0_20 = arith.constant 0 : index
    %c0_21 = arith.constant 0 : index
    %30 = vector.load %arg8[%c0_20, %c0_21] : memref<1x512xf32, #tpu.memory_space<vmem>>, vector<1x512xf32>
    tpu.vector_store %arg8[%c0_20, %c0_21], %29 {strides = array<i32>} : memref<1x512xf32, #tpu.memory_space<vmem>>, vector<1x512xf32>,
    return
  }
  func.func @transform_0(%arg0: i32) -> (i32, i32) {
    %c0_i32 = arith.constant 0 : i32
    %c0_i32_0 = arith.constant 0 : i32
    return %arg0, %c0_i32 : i32, i32
  }
  func.func @transform_1(%arg0: i32) -> (i32, i32) {
    %c0_i32 = arith.constant 0 : i32
    %c0_i32_0 = arith.constant 0 : i32
    %c0_i32_1 = arith.constant 0 : i32
    return %c0_i32, %c0_i32_0 : i32, i32
  }
  func.func @transform_2(%arg0: i32) -> (i32, i32) {
    %c0_i32 = arith.constant 0 : i32
    %c0_i32_0 = arith.constant 0 : i32
    %c0_i32_1 = arith.constant 0 : i32
    return %c0_i32, %c0_i32_0 : i32, i32
  }
  func.func @transform_3(%arg0: i32) -> (i32, i32) {
    %c0_i32 = arith.constant 0 : i32
    %c0_i32_0 = arith.constant 0 : i32
    %c0_i32_1 = arith.constant 0 : i32
    return %c0_i32, %c0_i32_0 : i32, i32
  }
  func.func @transform_4(%arg0: i32) -> (i32, i32) {
    %c0_i32 = arith.constant 0 : i32
    %c0_i32_0 = arith.constant 0 : i32
    %c0_i32_1 = arith.constant 0 : i32
    return %c0_i32, %c0_i32_0 : i32, i32
  }
  func.func @transform_5(%arg0: i32) -> (i32, i32) {
    %c0_i32 = arith.constant 0 : i32
    %c0_i32_0 = arith.constant 0 : i32
    %c0_i32_1 = arith.constant 0 : i32
    return %c0_i32, %c0_i32_0 : i32, i32
  }
  func.func @transform_6(%arg0: i32) -> (i32, i32) {
    %c0_i32 = arith.constant 0 : i32
    %c0_i32_0 = arith.constant 0 : i32
    %c0_i32_1 = arith.constant 0 : i32
    return %c0_i32, %c0_i32_0 : i32, i32
  }
  func.func @transform_7(%arg0: i32) -> (i32, i32) {
    %c0_i32 = arith.constant 0 : i32
    %c0_i32_0 = arith.constant 0 : i32
    return %c0_i32, %arg0 : i32, i32
  }
}

</mosaic_0001>

<llo_original>
// kernel: tpu_custom_call.1
$region0: #{tpu_custom_call.1}
  #allocation0 [shape = 'u32[]', space=smem, size = 0x4, offset = 0x4, fixed_abs, tag = 'smem constant byte address 0x4 - core index']
  #allocation1 [shape = 'u32[144,128]{1,0:T(1,128)}', space=vmem, size = 0x12000, scoped, tag = 'internal scratch']
  #allocation2 [shape = 'f32[1,1]{1,0:T(1,128)S(6)}', space=smem, size = 0x200, scoped, tag = 'scoped memory for tpu_custom_call.1']
  %s0 = inlined_call_operand.vmem [shape: bf16[512,32], index: 0, kind: input, shape index: {}]
  %s1 = inlined_call_operand.vmem [shape: bf16[32,128], index: 1, kind: input, shape index: {}]
  %s2 = inlined_call_operand.vmem [shape: f32[1,128], index: 2, kind: input, shape index: {}]
  %s3 = inlined_call_operand.vmem [shape: bf16[128,64], index: 3, kind: input, shape index: {}]
  %s4 = inlined_call_operand.vmem [shape: f32[1,64], index: 4, kind: input, shape index: {}]
  %s5 = inlined_call_operand.vmem [shape: f32[1,64], index: 5, kind: input, shape index: {}]
  %s6 = inlined_call_operand.<no memory space> [shape: f32[1,1], index: 6, kind: input, shape index: {}]
  %s7 = inlined_call_operand.hbm [shape: f32[1,512], index: 7, kind: output, shape index: {}]
  %s8 = sld [smem:[#allocation0]]
  $region38: #{tpu_custom_call.1} parent=0
    _
  %s10 = ssub.s32 1, %s8
  %s11 = scalar_select 0, %s10, %s8
  %12 = sst [smem:[#allocation2]] %s6
  $region1: #{tpu_custom_call.1} parent=0
    #allocation3 [shape = 'u8[2048]{0}', space=vmem, size = 0x800, scoped, tag = 'output window, operand 0, single buffered']
    #allocation4 [shape = 's32[1]{0}', space=sflag, size = 0x4, scoped, tag = 'scoped memory for tpu_custom_call.1']
    %13 = vsyncpa [#allocation4], 0
    // Predicated region
    $region2: #{tpu_custom_call.1} parent=1 // pred_check
      _
    $region3: #{tpu_custom_call.1} parent=1 // pred_check_branch
      %15 = sbr.rel (0) target = $region5
    $region4: #{tpu_custom_call.1} parent=1 // pred_region
      _
    $region5: #{tpu_custom_call.1} parent=1 // pred_fallthru
      _
    // Predicated region
    $region6: #{tpu_custom_call.1} parent=1 // pred_check
      _
    $region7: #{tpu_custom_call.1} parent=1 // pred_check_branch
      %17 = sbr.rel (0) target = $region9
    $region8: #{tpu_custom_call.1} parent=1 // pred_region
      _
    $region9: #{tpu_custom_call.1} parent=1 // pred_fallthru
      _
    // Predicated region
    $region10: #{tpu_custom_call.1} parent=1 // pred_check
      _
    $region11: #{tpu_custom_call.1} parent=1 // pred_check_branch
      %19 = sbr.rel (0) target = $region13
    $region12: #{tpu_custom_call.1} parent=1 // pred_region
      _
    $region13: #{tpu_custom_call.1} parent=1 // pred_fallthru
      _
    // Predicated region
    $region14: #{tpu_custom_call.1} parent=1 // pred_check
      _
    $region15: #{tpu_custom_call.1} parent=1 // pred_check_branch
      %21 = sbr.rel (0) target = $region17
    $region16: #{tpu_custom_call.1} parent=1 // pred_region
      _
    $region17: #{tpu_custom_call.1} parent=1 // pred_fallthru
      _
    // Predicated region
    $region18: #{tpu_custom_call.1} parent=1 // pred_check
      _
    $region19: #{tpu_custom_call.1} parent=1 // pred_check_branch
      %23 = sbr.rel (0) target = $region21
    $region20: #{tpu_custom_call.1} parent=1 // pred_region
      _
    $region21: #{tpu_custom_call.1} parent=1 // pred_fallthru
      _
    // Predicated region
    $region22: #{tpu_custom_call.1} parent=1 // pred_check
      _
    $region23: #{tpu_custom_call.1} parent=1 // pred_check_branch
      %25 = sbr.rel (0) target = $region25
    $region24: #{tpu_custom_call.1} parent=1 // pred_region
      _
    $region25: #{tpu_custom_call.1} parent=1 // pred_fallthru
      _
    // Predicated region
    $region26: #{tpu_custom_call.1} parent=1 // pred_check
      _
    $region27: #{tpu_custom_call.1} parent=1 // pred_check_branch
      %27 = sbr.rel (0) target = $region29
    $region28: #{tpu_custom_call.1} parent=1 // pred_region
      _
    $region29: #{tpu_custom_call.1} parent=1 // pred_fallthru
      _
    %v29 = vld [vmem:[%s0] sm:$0xf]
    %v30 = vld [vmem:[%s0 + $0x4] sm:$0xf]
    %v31 = vld [vmem:[%s0 + $0x8] sm:$0xf]
    %v32 = vld [vmem:[%s0 + $0xc] sm:$0xf]
    %v33 = vld [vmem:[%s0 + $0x10] sm:$0xf]
    %v34 = vld [vmem:[%s0 + $0x14] sm:$0xf]
    %v35 = vld [vmem:[%s0 + $0x18] sm:$0xf]
    %v36 = vld [vmem:[%s0 + $0x1c] sm:$0xf]
    %v37 = vld [vmem:[%s0 + $0x20] sm:$0xf]
    %v38 = vld [vmem:[%s0 + $0x24] sm:$0xf]
    %v39 = vld [vmem:[%s0 + $0x28] sm:$0xf]
    %v40 = vld [vmem:[%s0 + $0x2c] sm:$0xf]
    %v41 = vld [vmem:[%s0 + $0x30] sm:$0xf]
    %v42 = vld [vmem:[%s0 + $0x34] sm:$0xf]
    %v43 = vld [vmem:[%s0 + $0x38] sm:$0xf]
    %v44 = vld [vmem:[%s0 + $0x3c] sm:$0xf]
    %v45 = vld [vmem:[%s0 + $0x40] sm:$0xf]
    %v46 = vld [vmem:[%s0 + $0x44] sm:$0xf]
    %v47 = vld [vmem:[%s0 + $0x48] sm:$0xf]
    %v48 = vld [vmem:[%s0 + $0x4c] sm:$0xf]
    %v49 = vld [vmem:[%s0 + $0x50] sm:$0xf]
    %v50 = vld [vmem:[%s0 + $0x54] sm:$0xf]
    %v51 = vld [vmem:[%s0 + $0x58] sm:$0xf]
    %v52 = vld [vmem:[%s0 + $0x5c] sm:$0xf]
    %v53 = vld [vmem:[%s0 + $0x60] sm:$0xf]
    %v54 = vld [vmem:[%s0 + $0x64] sm:$0xf]
    %v55 = vld [vmem:[%s0 + $0x68] sm:$0xf]
    %v56 = vld [vmem:[%s0 + $0x6c] sm:$0xf]
    %v57 = vld [vmem:[%s0 + $0x70] sm:$0xf]
    %v58 = vld [vmem:[%s0 + $0x74] sm:$0xf]
    %v59 = vld [vmem:[%s0 + $0x78] sm:$0xf]
    %v60 = vld [vmem:[%s0 + $0x7c] sm:$0xf]
    %v61 = vld [vmem:[%s0 + $0x80] sm:$0xf]
    %v62 = vld [vmem:[%s0 + $0x84] sm:$0xf]
    %v63 = vld [vmem:[%s0 + $0x88] sm:$0xf]
    %v64 = vld [vmem:[%s0 + $0x8c] sm:$0xf]
    %v65 = vld [vmem:[%s0 + $0x90] sm:$0xf]
    %v66 = vld [vmem:[%s0 + $0x94] sm:$0xf]
    %v67 = vld [vmem:[%s0 + $0x98] sm:$0xf]
    %v68 = vld [vmem:[%s0 + $0x9c] sm:$0xf]
    %v69 = vld [vmem:[%s0 + $0xa0] sm:$0xf]
    %v70 = vld [vmem:[%s0 + $0xa4] sm:$0xf]
    %v71 = vld [vmem:[%s0 + $0xa8] sm:$0xf]
    %v72 = vld [vmem:[%s0 + $0xac] sm:$0xf]
    %v73 = vld [vmem:[%s0 + $0xb0] sm:$0xf]
    %v74 = vld [vmem:[%s0 + $0xb4] sm:$0xf]
    %v75 = vld [vmem:[%s0 + $0xb8] sm:$0xf]
    %v76 = vld [vmem:[%s0 + $0xbc] sm:$0xf]
    %v77 = vld [vmem:[%s0 + $0xc0] sm:$0xf]
    %v78 = vld [vmem:[%s0 + $0xc4] sm:$0xf]
    %v79 = vld [vmem:[%s0 + $0xc8] sm:$0xf]
    %v80 = vld [vmem:[%s0 + $0xcc] sm:$0xf]
    %v81 = vld [vmem:[%s0 + $0xd0] sm:$0xf]
    %v82 = vld [vmem:[%s0 + $0xd4] sm:$0xf]
    %v83 = vld [vmem:[%s0 + $0xd8] sm:$0xf]
    %v84 = vld [vmem:[%s0 + $0xdc] sm:$0xf]
    %v85 = vld [vmem:[%s0 + $0xe0] sm:$0xf]
    %v86 = vld [vmem:[%s0 + $0xe4] sm:$0xf]
    %v87 = vld [vmem:[%s0 + $0xe8] sm:$0xf]
    %v88 = vld [vmem:[%s0 + $0xec] sm:$0xf]
    %v89 = vld [vmem:[%s0 + $0xf0] sm:$0xf]
    %v90 = vld [vmem:[%s0 + $0xf4] sm:$0xf]
    %v91 = vld [vmem:[%s0 + $0xf8] sm:$0xf]
    %v92 = vld [vmem:[%s0 + $0xfc] sm:$0xf]
    %v93 = vld [vmem:[%s1] sm:$0xf]
    %v94 = vld [vmem:[%s1 + $0x4] sm:$0xf]
    %v95 = vld [vmem:[%s1 + $0x8] sm:$0xf]
    %v96 = vld [vmem:[%s1 + $0xc] sm:$0xf]
    %v97 = vld [vmem:[%s2] sm:$0x1]
    %v99 = vlaneseq
    %v100 = vshrl.u32 %v99, 7
    %v101 = vsub.s32 0, %v100
    %v102 = vrot.slane %v97, %v101
    %v168 = vunpack.c.l.b16 %v29
    %v169 = vunpack.c.l.b16 %v30
    %v170 = vunpack.c.l.b16 %v31
    %v171 = vunpack.c.l.b16 %v32
    %v172 = vunpack.c.l.b16 %v33
    %v173 = vunpack.c.l.b16 %v34
    %v174 = vunpack.c.l.b16 %v35
    %v175 = vunpack.c.l.b16 %v36
    %v176 = vunpack.c.l.b16 %v37
    %v177 = vunpack.c.l.b16 %v38
    %v178 = vunpack.c.l.b16 %v39
    %v179 = vunpack.c.l.b16 %v40
    %v180 = vunpack.c.l.b16 %v41
    %v181 = vunpack.c.l.b16 %v42
    %v182 = vunpack.c.l.b16 %v43
    %v183 = vunpack.c.l.b16 %v44
    %v184 = vunpack.c.l.b16 %v45
    %v185 = vunpack.c.l.b16 %v46
    %v186 = vunpack.c.l.b16 %v47
    %v187 = vunpack.c.l.b16 %v48
    %v188 = vunpack.c.l.b16 %v49
    %v189 = vunpack.c.l.b16 %v50
    %v190 = vunpack.c.l.b16 %v51
    %v191 = vunpack.c.l.b16 %v52
    %v192 = vunpack.c.l.b16 %v53
    %v193 = vunpack.c.l.b16 %v54
    %v194 = vunpack.c.l.b16 %v55
    %v195 = vunpack.c.l.b16 %v56
    %v196 = vunpack.c.l.b16 %v57
    %v197 = vunpack.c.l.b16 %v58
    %v198 = vunpack.c.l.b16 %v59
    %v199 = vunpack.c.l.b16 %v60
    %v200 = vunpack.c.l.b16 %v61
    %v201 = vunpack.c.l.b16 %v62
    %v202 = vunpack.c.l.b16 %v63
    %v203 = vunpack.c.l.b16 %v64
    %v204 = vunpack.c.l.b16 %v65
    %v205 = vunpack.c.l.b16 %v66
    %v206 = vunpack.c.l.b16 %v67
    %v207 = vunpack.c.l.b16 %v68
    %v208 = vunpack.c.l.b16 %v69
    %v209 = vunpack.c.l.b16 %v70
    %v210 = vunpack.c.l.b16 %v71
    %v211 = vunpack.c.l.b16 %v72
    %v212 = vunpack.c.l.b16 %v73
    %v213 = vunpack.c.l.b16 %v74
    %v214 = vunpack.c.l.b16 %v75
    %v215 = vunpack.c.l.b16 %v76
    %v216 = vunpack.c.l.b16 %v77
    %v217 = vunpack.c.l.b16 %v78
    %v218 = vunpack.c.l.b16 %v79
    %v219 = vunpack.c.l.b16 %v80
    %v220 = vunpack.c.l.b16 %v81
    %v221 = vunpack.c.l.b16 %v82
    %v222 = vunpack.c.l.b16 %v83
    %v223 = vunpack.c.l.b16 %v84
    %v224 = vunpack.c.l.b16 %v85
    %v225 = vunpack.c.l.b16 %v86
    %v226 = vunpack.c.l.b16 %v87
    %v227 = vunpack.c.l.b16 %v88
    %v228 = vunpack.c.l.b16 %v89
    %v229 = vunpack.c.l.b16 %v90
    %v230 = vunpack.c.l.b16 %v91
    %v231 = vunpack.c.l.b16 %v92
    %v232 = vpack.c.b16 %v169, %v168
    %v233 = vpack.c.b16 %v171, %v170
    %v234 = vpack.c.b16 %v173, %v172
    %v235 = vpack.c.b16 %v175, %v174
    %v236 = vpack.c.b16 %v177, %v176
    %v237 = vpack.c.b16 %v179, %v178
    %v238 = vpack.c.b16 %v181, %v180
    %v239 = vpack.c.b16 %v183, %v182
    %v240 = vpack.c.b16 %v185, %v184
    %v241 = vpack.c.b16 %v187, %v186
    %v242 = vpack.c.b16 %v189, %v188
    %v243 = vpack.c.b16 %v191, %v190
    %v244 = vpack.c.b16 %v193, %v192
    %v245 = vpack.c.b16 %v195, %v194
    %v246 = vpack.c.b16 %v197, %v196
    %v247 = vpack.c.b16 %v199, %v198
    %v248 = vpack.c.b16 %v201, %v200
    %v249 = vpack.c.b16 %v203, %v202
    %v250 = vpack.c.b16 %v205, %v204
    %v251 = vpack.c.b16 %v207, %v206
    %v252 = vpack.c.b16 %v209, %v208
    %v253 = vpack.c.b16 %v211, %v210
    %v254 = vpack.c.b16 %v213, %v212
    %v255 = vpack.c.b16 %v215, %v214
    %v256 = vpack.c.b16 %v217, %v216
    %v257 = vpack.c.b16 %v219, %v218
    %v258 = vpack.c.b16 %v221, %v220
    %v259 = vpack.c.b16 %v223, %v222
    %v260 = vpack.c.b16 %v225, %v224
    %v261 = vpack.c.b16 %v227, %v226
    %v262 = vpack.c.b16 %v229, %v228
    %v263 = vpack.c.b16 %v231, %v230
    %v268 = vunpack.c.l.b16 %v93
    %v269 = vunpack.c.l.b16 %v94
    %v270 = vunpack.c.l.b16 %v95
    %v271 = vunpack.c.l.b16 %v96
    %v272 = vpack.c.b16 %v269, %v268
    %v273 = vpack.c.b16 %v271, %v270
    %vm276 = vcmask 261120
    %v278 = vsel %vm276, %v232, 0
    %v281 = vsel %vm276, %v233, 0
    %v284 = vsel %vm276, %v234, 0
    %v287 = vsel %vm276, %v235, 0
    %v290 = vsel %vm276, %v236, 0
    %v293 = vsel %vm276, %v237, 0
    %v296 = vsel %vm276, %v238, 0
    %v299 = vsel %vm276, %v239, 0
    %v302 = vsel %vm276, %v240, 0
    %v305 = vsel %vm276, %v241, 0
    %v308 = vsel %vm276, %v242, 0
    %v311 = vsel %vm276, %v243, 0
    %v314 = vsel %vm276, %v244, 0
    %v317 = vsel %vm276, %v245, 0
    %v320 = vsel %vm276, %v246, 0
    %v323 = vsel %vm276, %v247, 0
    %v326 = vsel %vm276, %v248, 0
    %v329 = vsel %vm276, %v249, 0
    %v332 = vsel %vm276, %v250, 0
    %v335 = vsel %vm276, %v251, 0
    %v338 = vsel %vm276, %v252, 0
    %v341 = vsel %vm276, %v253, 0
    %v344 = vsel %vm276, %v254, 0
    %v347 = vsel %vm276, %v255, 0
    %v350 = vsel %vm276, %v256, 0
    %v353 = vsel %vm276, %v257, 0
    %v356 = vsel %vm276, %v258, 0
    %v359 = vsel %vm276, %v259, 0
    %v362 = vsel %vm276, %v260, 0
    %v365 = vsel %vm276, %v261, 0
    %v368 = vsel %vm276, %v262, 0
    %v371 = vsel %vm276, %v263, 0
    %373 = vmatprep.subr.bf16.mxu0 0
    %374 = vmatpush1.bf16.msra.mxu0 0
    %375 = vmatprep.subr.bf16.mxu0 0
    %376 = vmatpush1.bf16.msra.mxu0 0
    %377 = vmatprep.subr.bf16.mxu0 0
    %378 = vmatpush1.bf16.msra.mxu0 0
    %379 = vmatprep.subr.bf16.mxu0 0
    %380 = vmatpush1.bf16.msra.mxu0 0
    %381 = vmatprep.subr.bf16.mxu0 0
    %382 = vmatpush1.bf16.msra.mxu0 0
    %383 = vmatprep.subr.bf16.mxu0 0
    %384 = vmatpush1.bf16.msra.mxu0 0
    %385 = vmatprep.subr.bf16.mxu0 0
    %386 = vmatpush1.bf16.msra.mxu0 %v273
    %387 = vmatprep.subr.bf16.mxu0 0
    %388 = vmatpush1.bf16.msra.mxu0 %v272
    %389 = vmatprep.subr.bf16.mxu0 0
    %390 = vmatpush2.bf16.msra.mxu0 0
    %391 = vmatprep.subr.bf16.mxu0 0
    %392 = vmatpush2.bf16.msra.mxu0 0
    %393 = vmatprep.subr.bf16.mxu0 0
    %394 = vmatpush2.bf16.msra.mxu0 0
    %395 = vmatprep.subr.bf16.mxu0 0
    %396 = vmatpush2.bf16.msra.mxu0 0
    %397 = vmatprep.subr.bf16.mxu0 0
    %398 = vmatpush2.bf16.msra.mxu0 0
    %399 = vmatprep.subr.bf16.mxu0 0
    %400 = vmatpush2.bf16.msra.mxu0 0
    %401 = vmatprep.subr.bf16.mxu0 0
    %402 = vmatpush2.bf16.msra.mxu0 0
    %403 = vmatprep.subr.bf16.mxu0 0
    %404 = vmatpush2.bf16.msra.mxu0 0
    %405 = vmatprep.mubr.bf16.mxu0 0
    %406 = vmatmul.mubr.bf16.gmra.mxu0 %v278
    %v407 = vpop.f32.mrf.mxu0
    %v408 = vadd.f32 %v102, %v407
    %v409 = vpop.f32.mrf.mxu0
    %v410 = vpop.f32.mrf.mxu0
    %v411 = vadd.f32 %v102, %v410
    %v412 = vpop.f32.mrf.mxu0
    %413 = vmatprep.mubr.bf16.mxu0 0
    %414 = vmatmul.mubr.bf16.gmra.mxu0 %v281
    %v415 = vpop.f32.mrf.mxu0
    %v416 = vadd.f32 %v102, %v415
    %v417 = vpop.f32.mrf.mxu0
    %v418 = vpop.f32.mrf.mxu0
    %v419 = vadd.f32 %v102, %v418
    %v420 = vpop.f32.mrf.mxu0
    %421 = vmatprep.mubr.bf16.mxu0 0
    %422 = vmatmul.mubr.bf16.gmra.mxu0 %v284
    %v423 = vpop.f32.mrf.mxu0
    %v424 = vadd.f32 %v102, %v423
    %v425 = vpop.f32.mrf.mxu0
    %v426 = vpop.f32.mrf.mxu0
    %v427 = vadd.f32 %v102, %v426
    %v428 = vpop.f32.mrf.mxu0
    %429 = vmatprep.mubr.bf16.mxu0 0
    %430 = vmatmul.mubr.bf16.gmra.mxu0 %v287
    %v431 = vpop.f32.mrf.mxu0
    %v432 = vadd.f32 %v102, %v431
    %v433 = vpop.f32.mrf.mxu0
    %v434 = vpop.f32.mrf.mxu0
    %v435 = vadd.f32 %v102, %v434
    %v436 = vpop.f32.mrf.mxu0
    %437 = vmatprep.mubr.bf16.mxu0 0
    %438 = vmatmul.mubr.bf16.gmra.mxu0 %v290
    %v439 = vpop.f32.mrf.mxu0
    %v440 = vadd.f32 %v102, %v439
    %v441 = vpop.f32.mrf.mxu0
    %v442 = vpop.f32.mrf.mxu0
    %v443 = vadd.f32 %v102, %v442
    %v444 = vpop.f32.mrf.mxu0
    %445 = vmatprep.mubr.bf16.mxu0 0
    %446 = vmatmul.mubr.bf16.gmra.mxu0 %v293
    %v447 = vpop.f32.mrf.mxu0
    %v448 = vadd.f32 %v102, %v447
    %v449 = vpop.f32.mrf.mxu0
    %v450 = vpop.f32.mrf.mxu0
    %v451 = vadd.f32 %v102, %v450
    %v452 = vpop.f32.mrf.mxu0
    %453 = vmatprep.mubr.bf16.mxu0 0
    %454 = vmatmul.mubr.bf16.gmra.mxu0 %v296
    %v455 = vpop.f32.mrf.mxu0
    %v456 = vadd.f32 %v102, %v455
    %v457 = vpop.f32.mrf.mxu0
    %v458 = vpop.f32.mrf.mxu0
    %v459 = vadd.f32 %v102, %v458
    %v460 = vpop.f32.mrf.mxu0
    %461 = vmatprep.mubr.bf16.mxu0 0
    %462 = vmatmul.mubr.bf16.gmra.mxu0 %v299
    %v463 = vpop.f32.mrf.mxu0
    %v464 = vadd.f32 %v102, %v463
    %v465 = vpop.f32.mrf.mxu0
    %v466 = vpop.f32.mrf.mxu0
    %v467 = vadd.f32 %v102, %v466
    %v468 = vpop.f32.mrf.mxu0
    %469 = vmatprep.mubr.bf16.mxu0 0
    %470 = vmatmul.mubr.bf16.gmra.mxu0 %v302
    %v471 = vpop.f32.mrf.mxu0
    %v472 = vadd.f32 %v102, %v471
    %v473 = vpop.f32.mrf.mxu0
    %v474 = vpop.f32.mrf.mxu0
    %v475 = vadd.f32 %v102, %v474
    %v476 = vpop.f32.mrf.mxu0
    %477 = vmatprep.mubr.bf16.mxu0 0
    %478 = vmatmul.mubr.bf16.gmra.mxu0 %v305
    %v479 = vpop.f32.mrf.mxu0
    %v480 = vadd.f32 %v102, %v479
    %v481 = vpop.f32.mrf.mxu0
    %v482 = vpop.f32.mrf.mxu0
    %v483 = vadd.f32 %v102, %v482
    %v484 = vpop.f32.mrf.mxu0
    %485 = vmatprep.mubr.bf16.mxu0 0
    %486 = vmatmul.mubr.bf16.gmra.mxu0 %v308
    %v487 = vpop.f32.mrf.mxu0
    %v488 = vadd.f32 %v102, %v487
    %v489 = vpop.f32.mrf.mxu0
    %v490 = vpop.f32.mrf.mxu0
    %v491 = vadd.f32 %v102, %v490
    %v492 = vpop.f32.mrf.mxu0
    %493 = vmatprep.mubr.bf16.mxu0 0
    %494 = vmatmul.mubr.bf16.gmra.mxu0 %v311
    %v495 = vpop.f32.mrf.mxu0
    %v496 = vadd.f32 %v102, %v495
    %v497 = vpop.f32.mrf.mxu0
    %v498 = vpop.f32.mrf.mxu0
    %v499 = vadd.f32 %v102, %v498
    %v500 = vpop.f32.mrf.mxu0
    %501 = vmatprep.mubr.bf16.mxu0 0
    %502 = vmatmul.mubr.bf16.gmra.mxu0 %v314
    %v503 = vpop.f32.mrf.mxu0
    %v504 = vadd.f32 %v102, %v503
    %v505 = vpop.f32.mrf.mxu0
    %v506 = vpop.f32.mrf.mxu0
    %v507 = vadd.f32 %v102, %v506
    %v508 = vpop.f32.mrf.mxu0
    %509 = vmatprep.mubr.bf16.mxu0 0
    %510 = vmatmul.mubr.bf16.gmra.mxu0 %v317
    %v511 = vpop.f32.mrf.mxu0
    %v512 = vadd.f32 %v102, %v511
    %v513 = vpop.f32.mrf.mxu0
    %v514 = vpop.f32.mrf.mxu0
    %v515 = vadd.f32 %v102, %v514
    %v516 = vpop.f32.mrf.mxu0
    %517 = vmatprep.mubr.bf16.mxu0 0
    %518 = vmatmul.mubr.bf16.gmra.mxu0 %v320
    %v519 = vpop.f32.mrf.mxu0
    %v520 = vadd.f32 %v102, %v519
    %v521 = vpop.f32.mrf.mxu0
    %v522 = vpop.f32.mrf.mxu0
    %v523 = vadd.f32 %v102, %v522
    %v524 = vpop.f32.mrf.mxu0
    %525 = vmatprep.mubr.bf16.mxu0 0
    %526 = vmatmul.mubr.bf16.gmra.mxu0 %v323
    %v527 = vpop.f32.mrf.mxu0
    %v528 = vadd.f32 %v102, %v527
    %v529 = vpop.f32.mrf.mxu0
    %v530 = vpop.f32.mrf.mxu0
    %v531 = vadd.f32 %v102, %v530
    %v532 = vpop.f32.mrf.mxu0
    %533 = vmatprep.mubr.bf16.mxu0 0
    %534 = vmatmul.mubr.bf16.gmra.mxu0 %v326
    %v535 = vpop.f32.mrf.mxu0
    %v536 = vadd.f32 %v102, %v535
    %v537 = vpop.f32.mrf.mxu0
    %v538 = vpop.f32.mrf.mxu0
    %v539 = vadd.f32 %v102, %v538
    %v540 = vpop.f32.mrf.mxu0
    %541 = vmatprep.mubr.bf16.mxu0 0
    %542 = vmatmul.mubr.bf16.gmra.mxu0 %v329
    %v543 = vpop.f32.mrf.mxu0
    %v544 = vadd.f32 %v102, %v543
    %v545 = vpop.f32.mrf.mxu0
    %v546 = vpop.f32.mrf.mxu0
    %v547 = vadd.f32 %v102, %v546
    %v548 = vpop.f32.mrf.mxu0
    %549 = vmatprep.mubr.bf16.mxu0 0
    %550 = vmatmul.mubr.bf16.gmra.mxu0 %v332
    %v551 = vpop.f32.mrf.mxu0
    %v552 = vadd.f32 %v102, %v551
    %v553 = vpop.f32.mrf.mxu0
    %v554 = vpop.f32.mrf.mxu0
    %v555 = vadd.f32 %v102, %v554
    %v556 = vpop.f32.mrf.mxu0
    %557 = vmatprep.mubr.bf16.mxu0 0
    %558 = vmatmul.mubr.bf16.gmra.mxu0 %v335
    %v559 = vpop.f32.mrf.mxu0
    %v560 = vadd.f32 %v102, %v559
    %v561 = vpop.f32.mrf.mxu0
    %v562 = vpop.f32.mrf.mxu0
    %v563 = vadd.f32 %v102, %v562
    %v564 = vpop.f32.mrf.mxu0
    %565 = vmatprep.mubr.bf16.mxu0 0
    %566 = vmatmul.mubr.bf16.gmra.mxu0 %v338
    %v567 = vpop.f32.mrf.mxu0
    %v568 = vadd.f32 %v102, %v567
    %v569 = vpop.f32.mrf.mxu0
    %v570 = vpop.f32.mrf.mxu0
    %v571 = vadd.f32 %v102, %v570
    %v572 = vpop.f32.mrf.mxu0
    %573 = vmatprep.mubr.bf16.mxu0 0
    %574 = vmatmul.mubr.bf16.gmra.mxu0 %v341
    %v575 = vpop.f32.mrf.mxu0
    %v576 = vadd.f32 %v102, %v575
    %v577 = vpop.f32.mrf.mxu0
    %v578 = vpop.f32.mrf.mxu0
    %v579 = vadd.f32 %v102, %v578
    %v580 = vpop.f32.mrf.mxu0
    %581 = vmatprep.mubr.bf16.mxu0 0
    %582 = vmatmul.mubr.bf16.gmra.mxu0 %v344
    %v583 = vpop.f32.mrf.mxu0
    %v584 = vadd.f32 %v102, %v583
    %v585 = vpop.f32.mrf.mxu0
    %v586 = vpop.f32.mrf.mxu0
    %v587 = vadd.f32 %v102, %v586
    %v588 = vpop.f32.mrf.mxu0
    %589 = vmatprep.mubr.bf16.mxu0 0
    %590 = vmatmul.mubr.bf16.gmra.mxu0 %v347
    %v591 = vpop.f32.mrf.mxu0
    %v592 = vadd.f32 %v102, %v591
    %v593 = vpop.f32.mrf.mxu0
    %v594 = vpop.f32.mrf.mxu0
    %v595 = vadd.f32 %v102, %v594
    %v596 = vpop.f32.mrf.mxu0
    %597 = vmatprep.mubr.bf16.mxu0 0
    %598 = vmatmul.mubr.bf16.gmra.mxu0 %v350
    %v599 = vpop.f32.mrf.mxu0
    %v600 = vadd.f32 %v102, %v599
    %v601 = vpop.f32.mrf.mxu0
    %v602 = vpop.f32.mrf.mxu0
    %v603 = vadd.f32 %v102, %v602
    %v604 = vpop.f32.mrf.mxu0
    %605 = vmatprep.mubr.bf16.mxu0 0
    %606 = vmatmul.mubr.bf16.gmra.mxu0 %v353
    %v607 = vpop.f32.mrf.mxu0
    %v608 = vadd.f32 %v102, %v607
    %v609 = vpop.f32.mrf.mxu0
    %v610 = vpop.f32.mrf.mxu0
    %v611 = vadd.f32 %v102, %v610
    %v612 = vpop.f32.mrf.mxu0
    %613 = vmatprep.mubr.bf16.mxu0 0
    %614 = vmatmul.mubr.bf16.gmra.mxu0 %v356
    %v615 = vpop.f32.mrf.mxu0
    %v616 = vadd.f32 %v102, %v615
    %v617 = vpop.f32.mrf.mxu0
    %v618 = vpop.f32.mrf.mxu0
    %v619 = vadd.f32 %v102, %v618
    %v620 = vpop.f32.mrf.mxu0
    %621 = vmatprep.mubr.bf16.mxu0 0
    %622 = vmatmul.mubr.bf16.gmra.mxu0 %v359
    %v623 = vpop.f32.mrf.mxu0
    %v624 = vadd.f32 %v102, %v623
    %v625 = vpop.f32.mrf.mxu0
    %v626 = vpop.f32.mrf.mxu0
    %v627 = vadd.f32 %v102, %v626
    %v628 = vpop.f32.mrf.mxu0
    %629 = vmatprep.mubr.bf16.mxu0 0
    %630 = vmatmul.mubr.bf16.gmra.mxu0 %v362
    %v631 = vpop.f32.mrf.mxu0
    %v632 = vadd.f32 %v102, %v631
    %v633 = vpop.f32.mrf.mxu0
    %v634 = vpop.f32.mrf.mxu0
    %v635 = vadd.f32 %v102, %v634
    %v636 = vpop.f32.mrf.mxu0
    %637 = vmatprep.mubr.bf16.mxu0 0
    %638 = vmatmul.mubr.bf16.gmra.mxu0 %v365
    %v639 = vpop.f32.mrf.mxu0
    %v640 = vadd.f32 %v102, %v639
    %v641 = vpop.f32.mrf.mxu0
    %v642 = vpop.f32.mrf.mxu0
    %v643 = vadd.f32 %v102, %v642
    %v644 = vpop.f32.mrf.mxu0
    %645 = vmatprep.mubr.bf16.mxu0 0
    %646 = vmatmul.mubr.bf16.gmra.mxu0 %v368
    %v647 = vpop.f32.mrf.mxu0
    %v648 = vadd.f32 %v102, %v647
    %v649 = vpop.f32.mrf.mxu0
    %v650 = vpop.f32.mrf.mxu0
    %v651 = vadd.f32 %v102, %v650
    %v652 = vpop.f32.mrf.mxu0
    %653 = vmatprep.mubr.bf16.mxu0 0
    %654 = vmatmul.mubr.bf16.gmra.mxu0 %v371
    %v655 = vpop.f32.mrf.mxu0
    %v656 = vadd.f32 %v102, %v655
    %v657 = vpop.f32.mrf.mxu0
    %v658 = vpop.f32.mrf.mxu0
    %v659 = vadd.f32 %v102, %v658
    %v660 = vpop.f32.mrf.mxu0
    %661 = vdwg.mxu0
    %v662 = vmax.f32 %v408, 0.0
    %v663 = vmax.f32 %v411, 0.0
    %v664 = vmax.f32 %v416, 0.0
    %v665 = vmax.f32 %v419, 0.0
    %v666 = vmax.f32 %v424, 0.0
    %v667 = vmax.f32 %v427, 0.0
    %v668 = vmax.f32 %v432, 0.0
    %v669 = vmax.f32 %v435, 0.0
    %v670 = vmax.f32 %v440, 0.0
    %v671 = vmax.f32 %v443, 0.0
    %v672 = vmax.f32 %v448, 0.0
    %v673 = vmax.f32 %v451, 0.0
    %v674 = vmax.f32 %v456, 0.0
    %v675 = vmax.f32 %v459, 0.0
    %v676 = vmax.f32 %v464, 0.0
    %v677 = vmax.f32 %v467, 0.0
    %v678 = vmax.f32 %v472, 0.0
    %v679 = vmax.f32 %v475, 0.0
    %v680 = vmax.f32 %v480, 0.0
    %v681 = vmax.f32 %v483, 0.0
    %v682 = vmax.f32 %v488, 0.0
    %v683 = vmax.f32 %v491, 0.0
    %v684 = vmax.f32 %v496, 0.0
    %v685 = vmax.f32 %v499, 0.0
    %v686 = vmax.f32 %v504, 0.0
    %v687 = vmax.f32 %v507, 0.0
    %v688 = vmax.f32 %v512, 0.0
    %v689 = vmax.f32 %v515, 0.0
    %v690 = vmax.f32 %v520, 0.0
    %v691 = vmax.f32 %v523, 0.0
    %v692 = vmax.f32 %v528, 0.0
    %v693 = vmax.f32 %v531, 0.0
    %v694 = vmax.f32 %v536, 0.0
    %v695 = vmax.f32 %v539, 0.0
    %v696 = vmax.f32 %v544, 0.0
    %v697 = vmax.f32 %v547, 0.0
    %v698 = vmax.f32 %v552, 0.0
    %v699 = vmax.f32 %v555, 0.0
    %v700 = vmax.f32 %v560, 0.0
    %v701 = vmax.f32 %v563, 0.0
    %v702 = vmax.f32 %v568, 0.0
    %v703 = vmax.f32 %v571, 0.0
    %v704 = vmax.f32 %v576, 0.0
    %v705 = vmax.f32 %v579, 0.0
    %v706 = vmax.f32 %v584, 0.0
    %v707 = vmax.f32 %v587, 0.0
    %v708 = vmax.f32 %v592, 0.0
    %v709 = vmax.f32 %v595, 0.0
    %v710 = vmax.f32 %v600, 0.0
    %v711 = vmax.f32 %v603, 0.0
    %v712 = vmax.f32 %v608, 0.0
    %v713 = vmax.f32 %v611, 0.0
    %v714 = vmax.f32 %v616, 0.0
    %v715 = vmax.f32 %v619, 0.0
    %v716 = vmax.f32 %v624, 0.0
    %v717 = vmax.f32 %v627, 0.0
    %v718 = vmax.f32 %v632, 0.0
    %v719 = vmax.f32 %v635, 0.0
    %v720 = vmax.f32 %v640, 0.0
    %v721 = vmax.f32 %v643, 0.0
    %v722 = vmax.f32 %v648, 0.0
    %v723 = vmax.f32 %v651, 0.0
    %v724 = vmax.f32 %v656, 0.0
    %v725 = vmax.f32 %v659, 0.0
    %v726 = vpack.c.bf16 %v663, %v662
    %v727 = vpack.c.bf16 %v665, %v664
    %v728 = vpack.c.bf16 %v667, %v666
    %v729 = vpack.c.bf16 %v669, %v668
    %v730 = vpack.c.bf16 %v671, %v670
    %v731 = vpack.c.bf16 %v673, %v672
    %v732 = vpack.c.bf16 %v675, %v674
    %v733 = vpack.c.bf16 %v677, %v676
    %v734 = vpack.c.bf16 %v679, %v678
    %v735 = vpack.c.bf16 %v681, %v680
    %v736 = vpack.c.bf16 %v683, %v682
    %v737 = vpack.c.bf16 %v685, %v684
    %v738 = vpack.c.bf16 %v687, %v686
    %v739 = vpack.c.bf16 %v689, %v688
    %v740 = vpack.c.bf16 %v691, %v690
    %v741 = vpack.c.bf16 %v693, %v692
    %v742 = vpack.c.bf16 %v695, %v694
    %v743 = vpack.c.bf16 %v697, %v696
    %v744 = vpack.c.bf16 %v699, %v698
    %v745 = vpack.c.bf16 %v701, %v700
    %v746 = vpack.c.bf16 %v703, %v702
    %v747 = vpack.c.bf16 %v705, %v704
    %v748 = vpack.c.bf16 %v707, %v706
    %v749 = vpack.c.bf16 %v709, %v708
    %v750 = vpack.c.bf16 %v711, %v710
    %v751 = vpack.c.bf16 %v713, %v712
    %v752 = vpack.c.bf16 %v715, %v714
    %v753 = vpack.c.bf16 %v717, %v716
    %v754 = vpack.c.bf16 %v719, %v718
    %v755 = vpack.c.bf16 %v721, %v720
    %v756 = vpack.c.bf16 %v723, %v722
    %v757 = vpack.c.bf16 %v725, %v724
    %v758 = vld [vmem:[%s3] sm:$0xf]
    %v759 = vld [vmem:[%s3 + $0x4] sm:$0xf]
    %v760 = vld [vmem:[%s3 + $0x8] sm:$0xf]
    %v761 = vld [vmem:[%s3 + $0xc] sm:$0xf]
    %v762 = vld [vmem:[%s3 + $0x10] sm:$0xf]
    %v763 = vld [vmem:[%s3 + $0x14] sm:$0xf]
    %v764 = vld [vmem:[%s3 + $0x18] sm:$0xf]
    %v765 = vld [vmem:[%s3 + $0x1c] sm:$0xf]
    %v766 = vld [vmem:[%s3 + $0x20] sm:$0xf]
    %v767 = vld [vmem:[%s3 + $0x24] sm:$0xf]
    %v768 = vld [vmem:[%s3 + $0x28] sm:$0xf]
    %v769 = vld [vmem:[%s3 + $0x2c] sm:$0xf]
    %v770 = vld [vmem:[%s3 + $0x30] sm:$0xf]
    %v771 = vld [vmem:[%s3 + $0x34] sm:$0xf]
    %v772 = vld [vmem:[%s3 + $0x38] sm:$0xf]
    %v773 = vld [vmem:[%s3 + $0x3c] sm:$0xf]
    %v774 = vld [vmem:[%s4] sm:$0x1]
    %v776 = vlaneseq
    %v777 = vshrl.u32 %v776, 7
    %v778 = vsub.s32 0, %v777
    %v779 = vrot.slane %v774, %v778
    %v797 = vunpack.c.l.b16 %v758
    %v798 = vunpack.c.l.b16 %v759
    %v799 = vunpack.c.l.b16 %v760
    %v800 = vunpack.c.l.b16 %v761
    %v801 = vunpack.c.l.b16 %v762
    %v802 = vunpack.c.l.b16 %v763
    %v803 = vunpack.c.l.b16 %v764
    %v804 = vunpack.c.l.b16 %v765
    %v805 = vunpack.c.l.b16 %v766
    %v806 = vunpack.c.l.b16 %v767
    %v807 = vunpack.c.l.b16 %v768
    %v808 = vunpack.c.l.b16 %v769
    %v809 = vunpack.c.l.b16 %v770
    %v810 = vunpack.c.l.b16 %v771
    %v811 = vunpack.c.l.b16 %v772
    %v812 = vunpack.c.l.b16 %v773
    %v813 = vpack.c.b16 %v798, %v797
    %v814 = vpack.c.b16 %v800, %v799
    %v815 = vpack.c.b16 %v802, %v801
    %v816 = vpack.c.b16 %v804, %v803
    %v817 = vpack.c.b16 %v806, %v805
    %v818 = vpack.c.b16 %v808, %v807
    %v819 = vpack.c.b16 %v810, %v809
    %v820 = vpack.c.b16 %v812, %v811
    %829 = vmatprep.subr.bf16.mxu0 0
    %830 = vmatpush1.bf16.msra.mxu0 %v820
    %831 = vmatprep.subr.bf16.mxu0 0
    %832 = vmatpush1.bf16.msra.mxu0 %v819
    %833 = vmatprep.subr.bf16.mxu0 0
    %834 = vmatpush1.bf16.msra.mxu0 %v818
    %835 = vmatprep.subr.bf16.mxu0 0
    %836 = vmatpush1.bf16.msra.mxu0 %v817
    %837 = vmatprep.subr.bf16.mxu0 0
    %838 = vmatpush1.bf16.msra.mxu0 %v816
    %839 = vmatprep.subr.bf16.mxu0 0
    %840 = vmatpush1.bf16.msra.mxu0 %v815
    %841 = vmatprep.subr.bf16.mxu0 0
    %842 = vmatpush1.bf16.msra.mxu0 %v814
    %843 = vmatprep.subr.bf16.mxu0 0
    %844 = vmatpush1.bf16.msra.mxu0 %v813
    %845 = vmatprep.subr.bf16.mxu0 0
    %846 = vmatpush2.bf16.msra.mxu0 0
    %847 = vmatprep.subr.bf16.mxu0 0
    %848 = vmatpush2.bf16.msra.mxu0 0
    %849 = vmatprep.subr.bf16.mxu0 0
    %850 = vmatpush2.bf16.msra.mxu0 0
    %851 = vmatprep.subr.bf16.mxu0 0
    %852 = vmatpush2.bf16.msra.mxu0 0
    %853 = vmatprep.subr.bf16.mxu0 0
    %854 = vmatpush2.bf16.msra.mxu0 0
    %855 = vmatprep.subr.bf16.mxu0 0
    %856 = vmatpush2.bf16.msra.mxu0 0
    %857 = vmatprep.subr.bf16.mxu0 0
    %858 = vmatpush2.bf16.msra.mxu0 0
    %859 = vmatprep.subr.bf16.mxu0 0
    %860 = vmatpush2.bf16.msra.mxu0 0
    %861 = vmatprep.mubr.bf16.mxu0 0
    %862 = vmatmul.mubr.bf16.gmra.mxu0 %v726
    %v863 = vpop.f32.mrf.mxu0
    %v864 = vadd.f32 %v779, %v863
    %v865 = vpop.f32.mrf.mxu0
    %v866 = vpop.f32.mrf.mxu0
    %v867 = vadd.f32 %v779, %v866
    %v868 = vpop.f32.mrf.mxu0
    %869 = vmatprep.mubr.bf16.mxu0 0
    %870 = vmatmul.mubr.bf16.gmra.mxu0 %v727
    %v871 = vpop.f32.mrf.mxu0
    %v872 = vadd.f32 %v779, %v871
    %v873 = vpop.f32.mrf.mxu0
    %v874 = vpop.f32.mrf.mxu0
    %v875 = vadd.f32 %v779, %v874
    %v876 = vpop.f32.mrf.mxu0
    %877 = vmatprep.mubr.bf16.mxu0 0
    %878 = vmatmul.mubr.bf16.gmra.mxu0 %v728
    %v879 = vpop.f32.mrf.mxu0
    %v880 = vadd.f32 %v779, %v879
    %v881 = vpop.f32.mrf.mxu0
    %v882 = vpop.f32.mrf.mxu0
    %v883 = vadd.f32 %v779, %v882
    %v884 = vpop.f32.mrf.mxu0
    %885 = vmatprep.mubr.bf16.mxu0 0
    %886 = vmatmul.mubr.bf16.gmra.mxu0 %v729
    %v887 = vpop.f32.mrf.mxu0
    %v888 = vadd.f32 %v779, %v887
    %v889 = vpop.f32.mrf.mxu0
    %v890 = vpop.f32.mrf.mxu0
    %v891 = vadd.f32 %v779, %v890
    %v892 = vpop.f32.mrf.mxu0
    %893 = vmatprep.mubr.bf16.mxu0 0
    %894 = vmatmul.mubr.bf16.gmra.mxu0 %v730
    %v895 = vpop.f32.mrf.mxu0
    %v896 = vadd.f32 %v779, %v895
    %v897 = vpop.f32.mrf.mxu0
    %v898 = vpop.f32.mrf.mxu0
    %v899 = vadd.f32 %v779, %v898
    %v900 = vpop.f32.mrf.mxu0
    %901 = vmatprep.mubr.bf16.mxu0 0
    %902 = vmatmul.mubr.bf16.gmra.mxu0 %v731
    %v903 = vpop.f32.mrf.mxu0
    %v904 = vadd.f32 %v779, %v903
    %v905 = vpop.f32.mrf.mxu0
    %v906 = vpop.f32.mrf.mxu0
    %v907 = vadd.f32 %v779, %v906
    %v908 = vpop.f32.mrf.mxu0
    %909 = vmatprep.mubr.bf16.mxu0 0
    %910 = vmatmul.mubr.bf16.gmra.mxu0 %v732
    %v911 = vpop.f32.mrf.mxu0
    %v912 = vadd.f32 %v779, %v911
    %v913 = vpop.f32.mrf.mxu0
    %v914 = vpop.f32.mrf.mxu0
    %v915 = vadd.f32 %v779, %v914
    %v916 = vpop.f32.mrf.mxu0
    %917 = vmatprep.mubr.bf16.mxu0 0
    %918 = vmatmul.mubr.bf16.gmra.mxu0 %v733
    %v919 = vpop.f32.mrf.mxu0
    %v920 = vadd.f32 %v779, %v919
    %v921 = vpop.f32.mrf.mxu0
    %v922 = vpop.f32.mrf.mxu0
    %v923 = vadd.f32 %v779, %v922
    %v924 = vpop.f32.mrf.mxu0
    %925 = vmatprep.mubr.bf16.mxu0 0
    %926 = vmatmul.mubr.bf16.gmra.mxu0 %v734
    %v927 = vpop.f32.mrf.mxu0
    %v928 = vadd.f32 %v779, %v927
    %v929 = vpop.f32.mrf.mxu0
    %v930 = vpop.f32.mrf.mxu0
    %v931 = vadd.f32 %v779, %v930
    %v932 = vpop.f32.mrf.mxu0
    %933 = vmatprep.mubr.bf16.mxu0 0
    %934 = vmatmul.mubr.bf16.gmra.mxu0 %v735
    %v935 = vpop.f32.mrf.mxu0
    %v936 = vadd.f32 %v779, %v935
    %v937 = vpop.f32.mrf.mxu0
    %v938 = vpop.f32.mrf.mxu0
    %v939 = vadd.f32 %v779, %v938
    %v940 = vpop.f32.mrf.mxu0
    %941 = vmatprep.mubr.bf16.mxu0 0
    %942 = vmatmul.mubr.bf16.gmra.mxu0 %v736
    %v943 = vpop.f32.mrf.mxu0
    %v944 = vadd.f32 %v779, %v943
    %v945 = vpop.f32.mrf.mxu0
    %v946 = vpop.f32.mrf.mxu0
    %v947 = vadd.f32 %v779, %v946
    %v948 = vpop.f32.mrf.mxu0
    %949 = vmatprep.mubr.bf16.mxu0 0
    %950 = vmatmul.mubr.bf16.gmra.mxu0 %v737
    %v951 = vpop.f32.mrf.mxu0
    %v952 = vadd.f32 %v779, %v951
    %v953 = vpop.f32.mrf.mxu0
    %v954 = vpop.f32.mrf.mxu0
    %v955 = vadd.f32 %v779, %v954
    %v956 = vpop.f32.mrf.mxu0
    %957 = vmatprep.mubr.bf16.mxu0 0
    %958 = vmatmul.mubr.bf16.gmra.mxu0 %v738
    %v959 = vpop.f32.mrf.mxu0
    %v960 = vadd.f32 %v779, %v959
    %v961 = vpop.f32.mrf.mxu0
    %v962 = vpop.f32.mrf.mxu0
    %v963 = vadd.f32 %v779, %v962
    %v964 = vpop.f32.mrf.mxu0
    %965 = vmatprep.mubr.bf16.mxu0 0
    %966 = vmatmul.mubr.bf16.gmra.mxu0 %v739
    %v967 = vpop.f32.mrf.mxu0
    %v968 = vadd.f32 %v779, %v967
    %v969 = vpop.f32.mrf.mxu0
    %v970 = vpop.f32.mrf.mxu0
    %v971 = vadd.f32 %v779, %v970
    %v972 = vpop.f32.mrf.mxu0
    %973 = vmatprep.mubr.bf16.mxu0 0
    %974 = vmatmul.mubr.bf16.gmra.mxu0 %v740
    %v975 = vpop.f32.mrf.mxu0
    %v976 = vadd.f32 %v779, %v975
    %v977 = vpop.f32.mrf.mxu0
    %v978 = vpop.f32.mrf.mxu0
    %v979 = vadd.f32 %v779, %v978
    %v980 = vpop.f32.mrf.mxu0
    %981 = vmatprep.mubr.bf16.mxu0 0
    %982 = vmatmul.mubr.bf16.gmra.mxu0 %v741
    %v983 = vpop.f32.mrf.mxu0
    %v984 = vadd.f32 %v779, %v983
    %v985 = vpop.f32.mrf.mxu0
    %v986 = vpop.f32.mrf.mxu0
    %v987 = vadd.f32 %v779, %v986
    %v988 = vpop.f32.mrf.mxu0
    %989 = vmatprep.mubr.bf16.mxu0 0
    %990 = vmatmul.mubr.bf16.gmra.mxu0 %v742
    %v991 = vpop.f32.mrf.mxu0
    %v992 = vadd.f32 %v779, %v991
    %v993 = vpop.f32.mrf.mxu0
    %v994 = vpop.f32.mrf.mxu0
    %v995 = vadd.f32 %v779, %v994
    %v996 = vpop.f32.mrf.mxu0
    %997 = vmatprep.mubr.bf16.mxu0 0
    %998 = vmatmul.mubr.bf16.gmra.mxu0 %v743
    %v999 = vpop.f32.mrf.mxu0
    %v1000 = vadd.f32 %v779, %v999
    %v1001 = vpop.f32.mrf.mxu0
    %v1002 = vpop.f32.mrf.mxu0
    %v1003 = vadd.f32 %v779, %v1002
    %v1004 = vpop.f32.mrf.mxu0
    %1005 = vmatprep.mubr.bf16.mxu0 0
    %1006 = vmatmul.mubr.bf16.gmra.mxu0 %v744
    %v1007 = vpop.f32.mrf.mxu0
    %v1008 = vadd.f32 %v779, %v1007
    %v1009 = vpop.f32.mrf.mxu0
    %v1010 = vpop.f32.mrf.mxu0
    %v1011 = vadd.f32 %v779, %v1010
    %v1012 = vpop.f32.mrf.mxu0
    %1013 = vmatprep.mubr.bf16.mxu0 0
    %1014 = vmatmul.mubr.bf16.gmra.mxu0 %v745
    %v1015 = vpop.f32.mrf.mxu0
    %v1016 = vadd.f32 %v779, %v1015
    %v1017 = vpop.f32.mrf.mxu0
    %v1018 = vpop.f32.mrf.mxu0
    %v1019 = vadd.f32 %v779, %v1018
    %v1020 = vpop.f32.mrf.mxu0
    %1021 = vmatprep.mubr.bf16.mxu0 0
    %1022 = vmatmul.mubr.bf16.gmra.mxu0 %v746
    %v1023 = vpop.f32.mrf.mxu0
    %v1024 = vadd.f32 %v779, %v1023
    %v1025 = vpop.f32.mrf.mxu0
    %v1026 = vpop.f32.mrf.mxu0
    %v1027 = vadd.f32 %v779, %v1026
    %v1028 = vpop.f32.mrf.mxu0
    %1029 = vmatprep.mubr.bf16.mxu0 0
    %1030 = vmatmul.mubr.bf16.gmra.mxu0 %v747
    %v1031 = vpop.f32.mrf.mxu0
    %v1032 = vadd.f32 %v779, %v1031
    %v1033 = vpop.f32.mrf.mxu0
    %v1034 = vpop.f32.mrf.mxu0
    %v1035 = vadd.f32 %v779, %v1034
    %v1036 = vpop.f32.mrf.mxu0
    %1037 = vmatprep.mubr.bf16.mxu0 0
    %1038 = vmatmul.mubr.bf16.gmra.mxu0 %v748
    %v1039 = vpop.f32.mrf.mxu0
    %v1040 = vadd.f32 %v779, %v1039
    %v1041 = vpop.f32.mrf.mxu0
    %v1042 = vpop.f32.mrf.mxu0
    %v1043 = vadd.f32 %v779, %v1042
    %v1044 = vpop.f32.mrf.mxu0
    %1045 = vmatprep.mubr.bf16.mxu0 0
    %1046 = vmatmul.mubr.bf16.gmra.mxu0 %v749
    %v1047 = vpop.f32.mrf.mxu0
    %v1048 = vadd.f32 %v779, %v1047
    %v1049 = vpop.f32.mrf.mxu0
    %v1050 = vpop.f32.mrf.mxu0
    %v1051 = vadd.f32 %v779, %v1050
    %v1052 = vpop.f32.mrf.mxu0
    %1053 = vmatprep.mubr.bf16.mxu0 0
    %1054 = vmatmul.mubr.bf16.gmra.mxu0 %v750
    %v1055 = vpop.f32.mrf.mxu0
    %v1056 = vadd.f32 %v779, %v1055
    %v1057 = vpop.f32.mrf.mxu0
    %v1058 = vpop.f32.mrf.mxu0
    %v1059 = vadd.f32 %v779, %v1058
    %v1060 = vpop.f32.mrf.mxu0
    %1061 = vmatprep.mubr.bf16.mxu0 0
    %1062 = vmatmul.mubr.bf16.gmra.mxu0 %v751
    %v1063 = vpop.f32.mrf.mxu0
    %v1064 = vadd.f32 %v779, %v1063
    %v1065 = vpop.f32.mrf.mxu0
    %v1066 = vpop.f32.mrf.mxu0
    %v1067 = vadd.f32 %v779, %v1066
    %v1068 = vpop.f32.mrf.mxu0
    %1069 = vmatprep.mubr.bf16.mxu0 0
    %1070 = vmatmul.mubr.bf16.gmra.mxu0 %v752
    %v1071 = vpop.f32.mrf.mxu0
    %v1072 = vadd.f32 %v779, %v1071
    %v1073 = vpop.f32.mrf.mxu0
    %v1074 = vpop.f32.mrf.mxu0
    %v1075 = vadd.f32 %v779, %v1074
    %v1076 = vpop.f32.mrf.mxu0
    %1077 = vmatprep.mubr.bf16.mxu0 0
    %1078 = vmatmul.mubr.bf16.gmra.mxu0 %v753
    %v1079 = vpop.f32.mrf.mxu0
    %v1080 = vadd.f32 %v779, %v1079
    %v1081 = vpop.f32.mrf.mxu0
    %v1082 = vpop.f32.mrf.mxu0
    %v1083 = vadd.f32 %v779, %v1082
    %v1084 = vpop.f32.mrf.mxu0
    %1085 = vmatprep.mubr.bf16.mxu0 0
    %1086 = vmatmul.mubr.bf16.gmra.mxu0 %v754
    %v1087 = vpop.f32.mrf.mxu0
    %v1088 = vadd.f32 %v779, %v1087
    %v1089 = vpop.f32.mrf.mxu0
    %v1090 = vpop.f32.mrf.mxu0
    %v1091 = vadd.f32 %v779, %v1090
    %v1092 = vpop.f32.mrf.mxu0
    %1093 = vmatprep.mubr.bf16.mxu0 0
    %1094 = vmatmul.mubr.bf16.gmra.mxu0 %v755
    %v1095 = vpop.f32.mrf.mxu0
    %v1096 = vadd.f32 %v779, %v1095
    %v1097 = vpop.f32.mrf.mxu0
    %v1098 = vpop.f32.mrf.mxu0
    %v1099 = vadd.f32 %v779, %v1098
    %v1100 = vpop.f32.mrf.mxu0
    %1101 = vmatprep.mubr.bf16.mxu0 0
    %1102 = vmatmul.mubr.bf16.gmra.mxu0 %v756
    %v1103 = vpop.f32.mrf.mxu0
    %v1104 = vadd.f32 %v779, %v1103
    %v1105 = vpop.f32.mrf.mxu0
    %v1106 = vpop.f32.mrf.mxu0
    %v1107 = vadd.f32 %v779, %v1106
    %v1108 = vpop.f32.mrf.mxu0
    %1109 = vmatprep.mubr.bf16.mxu0 0
    %1110 = vmatmul.mubr.bf16.gmra.mxu0 %v757
    %v1111 = vpop.f32.mrf.mxu0
    %v1112 = vadd.f32 %v779, %v1111
    %v1113 = vpop.f32.mrf.mxu0
    %v1114 = vpop.f32.mrf.mxu0
    %v1115 = vadd.f32 %v779, %v1114
    %v1116 = vpop.f32.mrf.mxu0
    %1117 = vdwg.mxu0
    %v1118 = vmax.f32 %v864, 0.0
    %v1119 = vmax.f32 %v867, 0.0
    %v1120 = vmax.f32 %v872, 0.0
    %v1121 = vmax.f32 %v875, 0.0
    %v1122 = vmax.f32 %v880, 0.0
    %v1123 = vmax.f32 %v883, 0.0
    %v1124 = vmax.f32 %v888, 0.0
    %v1125 = vmax.f32 %v891, 0.0
    %v1126 = vmax.f32 %v896, 0.0
    %v1127 = vmax.f32 %v899, 0.0
    %v1128 = vmax.f32 %v904, 0.0
    %v1129 = vmax.f32 %v907, 0.0
    %v1130 = vmax.f32 %v912, 0.0
    %v1131 = vmax.f32 %v915, 0.0
    %v1132 = vmax.f32 %v920, 0.0
    %v1133 = vmax.f32 %v923, 0.0
    %v1134 = vmax.f32 %v928, 0.0
    %v1135 = vmax.f32 %v931, 0.0
    %v1136 = vmax.f32 %v936, 0.0
    %v1137 = vmax.f32 %v939, 0.0
    %v1138 = vmax.f32 %v944, 0.0
    %v1139 = vmax.f32 %v947, 0.0
    %v1140 = vmax.f32 %v952, 0.0
    %v1141 = vmax.f32 %v955, 0.0
    %v1142 = vmax.f32 %v960, 0.0
    %v1143 = vmax.f32 %v963, 0.0
    %v1144 = vmax.f32 %v968, 0.0
    %v1145 = vmax.f32 %v971, 0.0
    %v1146 = vmax.f32 %v976, 0.0
    %v1147 = vmax.f32 %v979, 0.0
    %v1148 = vmax.f32 %v984, 0.0
    %v1149 = vmax.f32 %v987, 0.0
    %v1150 = vmax.f32 %v992, 0.0
    %v1151 = vmax.f32 %v995, 0.0
    %v1152 = vmax.f32 %v1000, 0.0
    %v1153 = vmax.f32 %v1003, 0.0
    %v1154 = vmax.f32 %v1008, 0.0
    %v1155 = vmax.f32 %v1011, 0.0
    %v1156 = vmax.f32 %v1016, 0.0
    %v1157 = vmax.f32 %v1019, 0.0
    %v1158 = vmax.f32 %v1024, 0.0
    %v1159 = vmax.f32 %v1027, 0.0
    %v1160 = vmax.f32 %v1032, 0.0
    %v1161 = vmax.f32 %v1035, 0.0
    %v1162 = vmax.f32 %v1040, 0.0
    %v1163 = vmax.f32 %v1043, 0.0
    %v1164 = vmax.f32 %v1048, 0.0
    %v1165 = vmax.f32 %v1051, 0.0
    %v1166 = vmax.f32 %v1056, 0.0
    %v1167 = vmax.f32 %v1059, 0.0
    %v1168 = vmax.f32 %v1064, 0.0
    %v1169 = vmax.f32 %v1067, 0.0
    %v1170 = vmax.f32 %v1072, 0.0
    %v1171 = vmax.f32 %v1075, 0.0
    %v1172 = vmax.f32 %v1080, 0.0
    %v1173 = vmax.f32 %v1083, 0.0
    %v1174 = vmax.f32 %v1088, 0.0
    %v1175 = vmax.f32 %v1091, 0.0
    %v1176 = vmax.f32 %v1096, 0.0
    %v1177 = vmax.f32 %v1099, 0.0
    %v1178 = vmax.f32 %v1104, 0.0
    %v1179 = vmax.f32 %v1107, 0.0
    %v1180 = vmax.f32 %v1112, 0.0
    %v1181 = vmax.f32 %v1115, 0.0
    %v1182 = vld [vmem:[%s5] sm:$0x1]
    %s1183 = sld [smem:[#allocation2]]
    %v1184 = vstv %s1183
    %vm1185 = vcmask 523264
    %v1187 = vsel %vm1185, %v1182, 0
    %v1190 = vsel %vm1185, %v1118, 0
    %v1193 = vsel %vm1185, %v1119, 0
    %v1196 = vsel %vm1185, %v1120, 0
    %v1199 = vsel %vm1185, %v1121, 0
    %v1202 = vsel %vm1185, %v1122, 0
    %v1205 = vsel %vm1185, %v1123, 0
    %v1208 = vsel %vm1185, %v1124, 0
    %v1211 = vsel %vm1185, %v1125, 0
    %v1214 = vsel %vm1185, %v1126, 0
    %v1217 = vsel %vm1185, %v1127, 0
    %v1220 = vsel %vm1185, %v1128, 0
    %v1223 = vsel %vm1185, %v1129, 0
    %v1226 = vsel %vm1185, %v1130, 0
    %v1229 = vsel %vm1185, %v1131, 0
    %v1232 = vsel %vm1185, %v1132, 0
    %v1235 = vsel %vm1185, %v1133, 0
    %v1238 = vsel %vm1185, %v1134, 0
    %v1241 = vsel %vm1185, %v1135, 0
    %v1244 = vsel %vm1185, %v1136, 0
    %v1247 = vsel %vm1185, %v1137, 0
    %v1250 = vsel %vm1185, %v1138, 0
    %v1253 = vsel %vm1185, %v1139, 0
    %v1256 = vsel %vm1185, %v1140, 0
    %v1259 = vsel %vm1185, %v1141, 0
    %v1262 = vsel %vm1185, %v1142, 0
    %v1265 = vsel %vm1185, %v1143, 0
    %v1268 = vsel %vm1185, %v1144, 0
    %v1271 = vsel %vm1185, %v1145, 0
    %v1274 = vsel %vm1185, %v1146, 0
    %v1277 = vsel %vm1185, %v1147, 0
    %v1280 = vsel %vm1185, %v1148, 0
    %v1283 = vsel %vm1185, %v1149, 0
    %v1286 = vsel %vm1185, %v1150, 0
    %v1289 = vsel %vm1185, %v1151, 0
    %v1292 = vsel %vm1185, %v1152, 0
    %v1295 = vsel %vm1185, %v1153, 0
    %v1298 = vsel %vm1185, %v1154, 0
    %v1301 = vsel %vm1185, %v1155, 0
    %v1304 = vsel %vm1185, %v1156, 0
    %v1307 = vsel %vm1185, %v1157, 0
    %v1310 = vsel %vm1185, %v1158, 0
    %v1313 = vsel %vm1185, %v1159, 0
    %v1316 = vsel %vm1185, %v1160, 0
    %v1319 = vsel %vm1185, %v1161, 0
    %v1322 = vsel %vm1185, %v1162, 0
    %v1325 = vsel %vm1185, %v1163, 0
    %v1328 = vsel %vm1185, %v1164, 0
    %v1331 = vsel %vm1185, %v1165, 0
    %v1334 = vsel %vm1185, %v1166, 0
    %v1337 = vsel %vm1185, %v1167, 0
    %v1340 = vsel %vm1185, %v1168, 0
    %v1343 = vsel %vm1185, %v1169, 0
    %v1346 = vsel %vm1185, %v1170, 0
    %v1349 = vsel %vm1185, %v1171, 0
    %v1352 = vsel %vm1185, %v1172, 0
    %v1355 = vsel %vm1185, %v1173, 0
    %v1358 = vsel %vm1185, %v1174, 0
    %v1361 = vsel %vm1185, %v1175, 0
    %v1364 = vsel %vm1185, %v1176, 0
    %v1367 = vsel %vm1185, %v1177, 0
    %v1370 = vsel %vm1185, %v1178, 0
    %v1373 = vsel %vm1185, %v1179, 0
    %v1376 = vsel %vm1185, %v1180, 0
    %v1379 = vsel %vm1185, %v1181, 0
    %1381 = vmatprep.subr.mxu0 0.0
    %1382 = vmatpush1.xpose.msra.mxu0 %v1235
    %1383 = vmatprep.subr.mxu0 0.0
    %1384 = vmatpush1.xpose.msra.mxu0 %v1232
    %1385 = vmatprep.subr.mxu0 0.0
    %1386 = vmatpush1.xpose.msra.mxu0 %v1229
    %1387 = vmatprep.subr.mxu0 0.0
    %1388 = vmatpush1.xpose.msra.mxu0 %v1226
    %1389 = vmatprep.subr.mxu0 0.0
    %1390 = vmatpush1.xpose.msra.mxu0 %v1223
    %1391 = vmatprep.subr.mxu0 0.0
    %1392 = vmatpush1.xpose.msra.mxu0 %v1220
    %1393 = vmatprep.subr.mxu0 0.0
    %1394 = vmatpush1.xpose.msra.mxu0 %v1217
    %1395 = vmatprep.subr.mxu0 0.0
    %1396 = vmatpush1.xpose.msra.mxu0 %v1214
    %1397 = vmatprep.subr.mxu0 0.0
    %1398 = vmatpush1.xpose.msra.mxu0 %v1211
    %1399 = vmatprep.subr.mxu0 0.0
    %1400 = vmatpush1.xpose.msra.mxu0 %v1208
    %1401 = vmatprep.subr.mxu0 0.0
    %1402 = vmatpush1.xpose.msra.mxu0 %v1205
    %1403 = vmatprep.subr.mxu0 0.0
    %1404 = vmatpush1.xpose.msra.mxu0 %v1202
    %1405 = vmatprep.subr.mxu0 0.0
    %1406 = vmatpush1.xpose.msra.mxu0 %v1199
    %1407 = vmatprep.subr.mxu0 0.0
    %1408 = vmatpush1.xpose.msra.mxu0 %v1196
    %1409 = vmatprep.subr.mxu0 0.0
    %1410 = vmatpush1.xpose.msra.mxu0 %v1193
    %1411 = vmatprep.subr.mxu0 0.0
    %1412 = vmatpush1.xpose.msra.mxu0 %v1190
    %1413 = vmatprep.subr.mxu0 0.0
    %1414 = vmatpush2.xpose.msra.mxu0 %v1283
    %1415 = vmatprep.subr.mxu0 0.0
    %1416 = vmatpush2.xpose.msra.mxu0 %v1280
    %1417 = vmatprep.subr.mxu0 0.0
    %1418 = vmatpush2.xpose.msra.mxu0 %v1277
    %1419 = vmatprep.subr.mxu0 0.0
    %1420 = vmatpush2.xpose.msra.mxu0 %v1274
    %1421 = vmatprep.subr.mxu0 0.0
    %1422 = vmatpush2.xpose.msra.mxu0 %v1271
    %1423 = vmatprep.subr.mxu0 0.0
    %1424 = vmatpush2.xpose.msra.mxu0 %v1268
    %1425 = vmatprep.subr.mxu0 0.0
    %1426 = vmatpush2.xpose.msra.mxu0 %v1265
    %1427 = vmatprep.subr.mxu0 0.0
    %1428 = vmatpush2.xpose.msra.mxu0 %v1262
    %1429 = vmatprep.subr.mxu0 0.0
    %1430 = vmatpush2.xpose.msra.mxu0 %v1259
    %1431 = vmatprep.subr.mxu0 0.0
    %1432 = vmatpush2.xpose.msra.mxu0 %v1256
    %1433 = vmatprep.subr.mxu0 0.0
    %1434 = vmatpush2.xpose.msra.mxu0 %v1253
    %1435 = vmatprep.subr.mxu0 0.0
    %1436 = vmatpush2.xpose.msra.mxu0 %v1250
    %1437 = vmatprep.subr.mxu0 0.0
    %1438 = vmatpush2.xpose.msra.mxu0 %v1247
    %1439 = vmatprep.subr.mxu0 0.0
    %1440 = vmatpush2.xpose.msra.mxu0 %v1244
    %1441 = vmatprep.subr.mxu0 0.0
    %1442 = vmatpush2.xpose.msra.mxu0 %v1241
    %1443 = vmatprep.subr.mxu0 0.0
    %1444 = vmatpush2.xpose.msra.mxu0 %v1238
    %1445 = vmatprep.mubr.f32.mxu0 0.0
    %1446 = vmatmul.mubr.f32.gmra.mxu0 %v1187
    %v1447 = vpop.f32.mrf.mxu0
    %v1448 = vadd.f32 %v1184, %v1447
    %v1449 = vpop.f32.mrf.mxu0
    %v1450 = vadd.f32 %v1184, %v1449
    %1451 = vdwg.mxu0
    %1452 = vmatprep.subr.mxu0 0.0
    %1453 = vmatpush1.xpose.msra.mxu0 %v1331
    %1454 = vmatprep.subr.mxu0 0.0
    %1455 = vmatpush1.xpose.msra.mxu0 %v1328
    %1456 = vmatprep.subr.mxu0 0.0
    %1457 = vmatpush1.xpose.msra.mxu0 %v1325
    %1458 = vmatprep.subr.mxu0 0.0
    %1459 = vmatpush1.xpose.msra.mxu0 %v1322
    %1460 = vmatprep.subr.mxu0 0.0
    %1461 = vmatpush1.xpose.msra.mxu0 %v1319
    %1462 = vmatprep.subr.mxu0 0.0
    %1463 = vmatpush1.xpose.msra.mxu0 %v1316
    %1464 = vmatprep.subr.mxu0 0.0
    %1465 = vmatpush1.xpose.msra.mxu0 %v1313
    %1466 = vmatprep.subr.mxu0 0.0
    %1467 = vmatpush1.xpose.msra.mxu0 %v1310
    %1468 = vmatprep.subr.mxu0 0.0
    %1469 = vmatpush1.xpose.msra.mxu0 %v1307
    %1470 = vmatprep.subr.mxu0 0.0
    %1471 = vmatpush1.xpose.msra.mxu0 %v1304
    %1472 = vmatprep.subr.mxu0 0.0
    %1473 = vmatpush1.xpose.msra.mxu0 %v1301
    %1474 = vmatprep.subr.mxu0 0.0
    %1475 = vmatpush1.xpose.msra.mxu0 %v1298
    %1476 = vmatprep.subr.mxu0 0.0
    %1477 = vmatpush1.xpose.msra.mxu0 %v1295
    %1478 = vmatprep.subr.mxu0 0.0
    %1479 = vmatpush1.xpose.msra.mxu0 %v1292
    %1480 = vmatprep.subr.mxu0 0.0
    %1481 = vmatpush1.xpose.msra.mxu0 %v1289
    %1482 = vmatprep.subr.mxu0 0.0
    %1483 = vmatpush1.xpose.msra.mxu0 %v1286
    %1484 = vmatprep.subr.mxu0 0.0
    %1485 = vmatpush2.xpose.msra.mxu0 %v1379
    %1486 = vmatprep.subr.mxu0 0.0
    %1487 = vmatpush2.xpose.msra.mxu0 %v1376
    %1488 = vmatprep.subr.mxu0 0.0
    %1489 = vmatpush2.xpose.msra.mxu0 %v1373
    %1490 = vmatprep.subr.mxu0 0.0
    %1491 = vmatpush2.xpose.msra.mxu0 %v1370
    %1492 = vmatprep.subr.mxu0 0.0
    %1493 = vmatpush2.xpose.msra.mxu0 %v1367
    %1494 = vmatprep.subr.mxu0 0.0
    %1495 = vmatpush2.xpose.msra.mxu0 %v1364
    %1496 = vmatprep.subr.mxu0 0.0
    %1497 = vmatpush2.xpose.msra.mxu0 %v1361
    %1498 = vmatprep.subr.mxu0 0.0
    %1499 = vmatpush2.xpose.msra.mxu0 %v1358
    %1500 = vmatprep.subr.mxu0 0.0
    %1501 = vmatpush2.xpose.msra.mxu0 %v1355
    %1502 = vmatprep.subr.mxu0 0.0
    %1503 = vmatpush2.xpose.msra.mxu0 %v1352
    %1504 = vmatprep.subr.mxu0 0.0
    %1505 = vmatpush2.xpose.msra.mxu0 %v1349
    %1506 = vmatprep.subr.mxu0 0.0
    %1507 = vmatpush2.xpose.msra.mxu0 %v1346
    %1508 = vmatprep.subr.mxu0 0.0
    %1509 = vmatpush2.xpose.msra.mxu0 %v1343
    %1510 = vmatprep.subr.mxu0 0.0
    %1511 = vmatpush2.xpose.msra.mxu0 %v1340
    %1512 = vmatprep.subr.mxu0 0.0
    %1513 = vmatpush2.xpose.msra.mxu0 %v1337
    %1514 = vmatprep.subr.mxu0 0.0
    %1515 = vmatpush2.xpose.msra.mxu0 %v1334
    %1516 = vmatprep.mubr.f32.mxu0 0.0
    %1517 = vmatmul.mubr.f32.gmra.mxu0 %v1187
    %v1518 = vpop.f32.mrf.mxu0
    %v1519 = vadd.f32 %v1184, %v1518
    %v1520 = vpop.f32.mrf.mxu0
    %v1521 = vadd.f32 %v1184, %v1520
    %1522 = vdwg.mxu0
    %v1523 = vxor.u32 %v1448, 2147483648
    %v1524 = vxor.u32 %v1450, 2147483648
    %v1525 = vxor.u32 %v1519, 2147483648
    %v1526 = vxor.u32 %v1521, 2147483648
    %v1527 = vmul.f32 %v1523, 1.442695
    %v1528 = vpow.pop %v1527
    %v1529 = vmul.f32 %v1524, 1.442695
    %v1530 = vpow.pop %v1529
    %v1531 = vmul.f32 %v1525, 1.442695
    %v1532 = vpow.pop %v1531
    %v1533 = vmul.f32 %v1526, 1.442695
    %v1534 = vpow.pop %v1533
    %v1535 = vadd.f32 %v1528, 1.0
    %v1536 = vadd.f32 %v1530, 1.0
    %v1537 = vadd.f32 %v1532, 1.0
    %v1538 = vadd.f32 %v1534, 1.0
    %v1539 = vrcp.pop %v1535
    %v1540 = vmul.f32 1.0, %v1539
    %v1541 = vrcp.pop %v1536
    %v1542 = vmul.f32 1.0, %v1541
    %v1543 = vrcp.pop %v1537
    %v1544 = vmul.f32 1.0, %v1543
    %v1545 = vrcp.pop %v1538
    %v1546 = vmul.f32 1.0, %v1545
    %v1547 = vmul.f32 %v1540, 4.0
    %v1548 = vmul.f32 %v1542, 4.0
    %v1549 = vmul.f32 %v1544, 4.0
    %v1550 = vmul.f32 %v1546, 4.0
    %v1551 = vadd.f32 %v1547, 1.0
    %v1552 = vadd.f32 %v1548, 1.0
    %v1553 = vadd.f32 %v1549, 1.0
    %v1554 = vadd.f32 %v1550, 1.0
    %v1559 = vcombine.low %v1551, %v1552
    %v1560 = vcombine.low %v1553, %v1554
    %v1562 = vunpack.c.l.s4 1966171168
    %v1563 = vunpack.c.0.s8 %v1562
    %v1564 = vlaneseq
    %v1565 = vshrl.u32 %v1564, 7
    %v1566 = vsub.s32 %v1563, %v1565
    %v1567 = vrot.slane %v1559, %v1566
    %v1569 = vunpack.c.l.s4 1966171168
    %v1570 = vunpack.c.0.s8 %v1569
    %v1571 = vlaneseq
    %v1572 = vshrl.u32 %v1571, 7
    %v1573 = vsub.s32 %v1570, %v1572
    %v1574 = vrot.slane %v1560, %v1573
    %v1575 = vcombine.low %v1567, %v1574
    %v1577 = vunpack.c.l.s4 1966171168
    %v1578 = vunpack.c.0.s8 %v1577
    %v1579 = vlaneseq
    %v1580 = vshrl.u32 %v1579, 7
    %v1581 = vsub.s32 %v1578, %v1580
    %v1582 = vrot.slane %v1575, %v1581
    %v1584 = vlaneseq
    %vm1585 = vcmp.ge.s32.totalorder %v1584, 0
    %vm1586 = vcmp.lt.s32.totalorder %v1584, 512
    %vm1587 = vmand %vm1585, %vm1586
    %1588 = vst.msk [vmem:[#allocation3] sm:$0xf] %vm1587, %v1582
    // Predicated region
    $region30: #{tpu_custom_call.1} parent=1 // pred_check
      _
    $region31: #{tpu_custom_call.1} parent=1 // pred_check_branch
      %1590 = sbr.rel (0) target = $region33
    $region32: #{tpu_custom_call.1} parent=1 // pred_region
      %s1592 = ssub.s32 64, 64
      %1593 = vsyncadd [#allocation4], %s1592
      %s1595 = sshll.u32 [#allocation3], 4
      %s1596 = int_to_ptr.vmem [resolvable:$true] %s1595
      %1598 = dma.vmem_to_hbm [thread:$0]  %s1596, 64, %s7, [#allocation4]
    $region33: #{tpu_custom_call.1} parent=1 // pred_fallthru
      _
    // Predicated region
    $region34: #{tpu_custom_call.1} parent=1 // pred_check
      _
    $region35: #{tpu_custom_call.1} parent=1 // pred_check_branch
      %1600 = sbr.rel (0) target = $region37
    $region36: #{tpu_custom_call.1} parent=1 // pred_region
      %1601 = dma.done [#allocation4], 64
    $region37: #{tpu_custom_call.1} parent=1 // pred_fallthru
      _
    %1602 = vsyncpa [#allocation4], 1

</llo_original>
